<compile_context>
chip_gen: v7x
topology: tpu7x:2x2x1
jax: 0.10.0
libtpu: 0.0.40
codegen_flags: <defaults>
</compile_context>

<pallas_src>
import functools

import jax
import jax.numpy as jnp
from jax import lax
from jax.experimental import pallas as pl
from jax.experimental.pallas import tpu as pltpu


def cosine_schedule(timesteps, s=0.008):
    # Matches the PyTorch spec: linspace(0, steps, steps).
    steps = timesteps + 1
    x = jnp.linspace(0.0, float(steps), steps)
    alphas_cumprod = jnp.cos((x / steps + s) / (1 + s) * jnp.pi * 0.5) ** 2
    alphas_cumprod = alphas_cumprod / alphas_cumprod[0]
    alphas = alphas_cumprod[1:] / alphas_cumprod[:-1]
    return jnp.clip(alphas, 0.001, 1.0)


def _diffusion_loss_kernel(sa_ref, s1a_ref,            # SMEM (B,) per-batch scalars
                           x0p_ref, np_ref, tgt_ref,   # VMEM (B,HW,Kp)/(B,HW,Kp)/(B,HW,Np)
                           w_ref, bt_ref,              # VMEM (Kp, Np), (B, 1, Np)
                           out_ref,                    # SMEM (1,) scalar output
                           *, B):
    w = w_ref[...]                                     # (Kp, Np), loaded once
    abs_acc = None
    for b in range(B):                                 # static unroll, B is tiny
        # q_sample on the im2col'd patches (blend is linear, so this equals
        # im2col(q_sample(x_0, t, noise))).
        xt = sa_ref[b] * x0p_ref[b] + s1a_ref[b] * np_ref[b]          # (HW, Kp)
        # 3x3 SAME conv == one lane-dense MXU matmul against (Kp, Np) weights,
        # plus (bias + timestep embedding), pre-summed per batch in the wrapper.
        pred = jnp.dot(xt, w, preferred_element_type=jnp.float32) + bt_ref[b]
        d = jnp.abs(pred - tgt_ref[b])                                 # (HW, Np)
        abs_acc = d if abs_acc is None else abs_acc + d
    # Single cross-lane/sublane reduce at the very end; zero-padded lanes
    # contribute exactly 0 to the sum.
    out_ref[0] = jnp.sum(abs_acc)


def diffusion_l1_loss(x0, noise, t, conv_w, conv_b, temb_table, scheduler_hat):
    """x0, noise: (B, C, H, W) float32 (NCHW, PyTorch convention)."""
    x0 = x0.astype(jnp.float32)
    noise = noise.astype(jnp.float32)
    B, C, H, W = x0.shape
    HW = H * W
    K = 9 * C
    Kp = max(128, -(-K // 128) * 128)      # lane-dense contraction dim
    Np = max(128, -(-C // 128) * 128)      # lane-dense output-channel dim

    # extract(scheduler_hat, t, x.shape) -> per-batch q_sample scalars (SMEM).
    ahat = scheduler_hat[t].astype(jnp.float32)                        # (B,)
    sqrt_ahat = jnp.sqrt(ahat)
    sqrt_1m_ahat = jnp.sqrt(1.0 - ahat)

    # NCHW -> NHWC, zero-pad spatially for the SAME conv, then im2col so the
    # kernel can do a single matmul. Tap index = dy*3 + dx, column = tap*C + c.
    def im2col(x_nchw):
        x = jnp.transpose(x_nchw, (0, 2, 3, 1))                        # (B,H,W,C)
        xp = jnp.pad(x, ((0, 0), (1, 1), (1, 1), (0, 0)))              # (B,H+2,W+2,C)
        cols = [xp[:, dy:dy + H, dx:dx + W, :]
                for dy in range(3) for dx in range(3)]
        patches = jnp.stack(cols, axis=3).reshape(B, HW, K)            # (B,HW,9C)
        return jnp.pad(patches, ((0, 0), (0, 0), (0, Kp - K)))         # (B,HW,Kp)

    x0_patches = im2col(x0)
    noise_patches = im2col(noise)

    # L1 target, zero-padded on the channel (lane) axis.
    noise_tgt = jnp.pad(
        jnp.transpose(noise, (0, 2, 3, 1)).reshape(B, HW, C),
        ((0, 0), (0, 0), (0, Np - C)))                                 # (B,HW,Np)

    # OIHW -> (9*Cin, Cout) with row index tap*Cin + cin, zero-padded.
    w_mat = jnp.transpose(conv_w, (2, 3, 1, 0)).reshape(K, C)
    w_mat = jnp.pad(w_mat, ((0, Kp - K), (0, Np - C)))                 # (Kp, Np)

    # Bias + timestep embedding, pre-summed per batch element, zero-padded.
    bt = conv_b.reshape(1, C) + temb_table[t].reshape(B, C)            # (B, C)
    bt = jnp.pad(bt, ((0, 0), (0, Np - C))).reshape(B, 1, Np)          # (B,1,Np)

    kernel = functools.partial(_diffusion_loss_kernel, B=B)

    loss_sum = pl.pallas_call(
        kernel,
        out_shape=jax.ShapeDtypeStruct((1,), jnp.float32),
        in_specs=[
            pl.BlockSpec(memory_space=pltpu.MemorySpace.SMEM),   # sqrt_ahat (B,)
            pl.BlockSpec(memory_space=pltpu.MemorySpace.SMEM),   # sqrt_1m_ahat (B,)
            pl.BlockSpec(memory_space=pltpu.MemorySpace.VMEM),   # x0 patches
            pl.BlockSpec(memory_space=pltpu.MemorySpace.VMEM),   # noise patches
            pl.BlockSpec(memory_space=pltpu.MemorySpace.VMEM),   # noise target
            pl.BlockSpec(memory_space=pltpu.MemorySpace.VMEM),   # conv weights
            pl.BlockSpec(memory_space=pltpu.MemorySpace.VMEM),   # bias + temb
        ],
        out_specs=pl.BlockSpec(memory_space=pltpu.MemorySpace.SMEM),
    )(sqrt_ahat, sqrt_1m_ahat, x0_patches, noise_patches, noise_tgt,
      w_mat, bt)

    # F.l1_loss(pred_noise, noise) -> mean over all (real) elements.
    return loss_sum[0] / (B * C * H * W)


if __name__ == "__main__":
    B, C, H, W = 2, 4, 16, 16
    TIMESTEPS = 50

    key = jax.random.PRNGKey(0)
    k_x, k_n, k_t, k_w, k_e = jax.random.split(key, 5)

    # Inputs to Diffusion.forward(x_0, noise)  (NCHW, like PyTorch).
    x0 = jax.random.normal(k_x, (B, C, H, W), dtype=jnp.float32)
    noise = jax.random.normal(k_n, (B, C, H, W), dtype=jnp.float32)
    # forward() draws t ~ randint(0, num_timesteps, (B,)); deterministic here.
    t = jax.random.randint(k_t, (B,), 0, TIMESTEPS)

    # Schedule coefficients from __init__.
    scheduler = cosine_schedule(TIMESTEPS)
    scheduler_hat = jnp.cumprod(scheduler)

    # Deterministic synthetic denoiser params: Conv2d(C, C, 3, padding=1) + t-emb.
    conv_w = 0.1 * jax.random.normal(k_w, (C, C, 3, 3), dtype=jnp.float32)  # OIHW
    conv_b = jnp.zeros((C,), dtype=jnp.float32)
    temb_table = 0.1 * jax.random.normal(k_e, (TIMESTEPS, C), dtype=jnp.float32)

    loss = diffusion_l1_loss(x0, noise, t, conv_w, conv_b, temb_table,
                             scheduler_hat)
    loss = jax.block_until_ready(loss)

    # Pure-JAX reference (same math, NCHW) for validation.
    ahat = scheduler_hat[t].reshape(B, 1, 1, 1)
    x_t = jnp.sqrt(ahat) * x0 + jnp.sqrt(1.0 - ahat) * noise
    pred = lax.conv_general_dilated(
        x_t, conv_w, window_strides=(1, 1), padding="SAME",
        dimension_numbers=("NCHW", "OIHW", "NCHW"))
    pred = pred + conv_b.reshape(1, C, 1, 1) + temb_table[t].reshape(B, C, 1, 1)
    ref_loss = jnp.mean(jnp.abs(pred - noise))

    assert jnp.allclose(loss, ref_loss, rtol=1e-4, atol=1e-5), (loss, ref_loss)
    print("KERNEL_OK")
</pallas_src>

<mosaic_0001>
module attributes {stable_mosaic.version = 11 : i64} {
  func.func @_diffusion_loss_kernel(%arg0: memref<2xf32, #tpu.memory_space<smem>>, %arg1: memref<2xf32, #tpu.memory_space<smem>>, %arg2: memref<2x256x128xf32, #tpu.memory_space<vmem>>, %arg3: memref<2x256x128xf32, #tpu.memory_space<vmem>>, %arg4: memref<2x256x128xf32, #tpu.memory_space<vmem>>, %arg5: memref<128x128xf32, #tpu.memory_space<vmem>>, %arg6: memref<2x1x128xf32, #tpu.memory_space<vmem>>, %arg7: memref<1xf32, #tpu.memory_space<smem>>) attributes {dimension_semantics = [], scalar_prefetch = 0 : i64, scratch_operands = 0 : i64, tpu.core_type = #tpu.core_type<tc>} {
    %c0 = arith.constant 0 : index
    %c0_0 = arith.constant 0 : index
    %0 = vector.load %arg5[%c0, %c0_0] : memref<128x128xf32, #tpu.memory_space<vmem>>, vector<128x128xf32>
    %c0_1 = arith.constant 0 : index
    %1 = memref.load %arg0[%c0_1] : memref<2xf32, #tpu.memory_space<smem>>
    %c0_2 = arith.constant 0 : index
    %c0_3 = arith.constant 0 : index
    %c0_4 = arith.constant 0 : index
    %2 = vector.load %arg2[%c0_2, %c0_3, %c0_4] : memref<2x256x128xf32, #tpu.memory_space<vmem>>, vector<1x256x128xf32>
    %3 = vector.shape_cast %2 : vector<1x256x128xf32> to vector<256x128xf32>
    %4 = vector.broadcast %1 : f32 to vector<256x128xf32>
    %5 = arith.mulf %4, %3 : vector<256x128xf32>
    %c0_5 = arith.constant 0 : index
    %6 = memref.load %arg1[%c0_5] : memref<2xf32, #tpu.memory_space<smem>>
    %c0_6 = arith.constant 0 : index
    %c0_7 = arith.constant 0 : index
    %c0_8 = arith.constant 0 : index
    %7 = vector.load %arg3[%c0_6, %c0_7, %c0_8] : memref<2x256x128xf32, #tpu.memory_space<vmem>>, vector<1x256x128xf32>
    %8 = vector.shape_cast %7 : vector<1x256x128xf32> to vector<256x128xf32>
    %9 = vector.broadcast %6 : f32 to vector<256x128xf32>
    %10 = arith.mulf %9, %8 : vector<256x128xf32>
    %11 = arith.addf %5, %10 : vector<256x128xf32>
    %cst = arith.constant dense<0.000000e+00> : vector<256x128xf32>
    %12 = tpu.matmul %11, %0, %cst {dimension_numbers = #tpu.dot_dimension_numbers<[1], [0], [0], [1], [0, 0, 1, 1], [], []>} : vector<256x128xf32>, vector<128x128xf32>, vector<256x128xf32> -> vector<256x128xf32>
    %c0_9 = arith.constant 0 : index
    %c0_10 = arith.constant 0 : index
    %c0_11 = arith.constant 0 : index
    %13 = vector.load %arg6[%c0_9, %c0_10, %c0_11] : memref<2x1x128xf32, #tpu.memory_space<vmem>>, vector<1x1x128xf32>
    %14 = vector.shape_cast %13 : vector<1x1x128xf32> to vector<1x128xf32>
    %15 = vector.broadcast %14 : vector<1x128xf32> to vector<256x128xf32>
    %16 = arith.addf %12, %15 : vector<256x128xf32>
    %c0_12 = arith.constant 0 : index
    %c0_13 = arith.constant 0 : index
    %c0_14 = arith.constant 0 : index
    %17 = vector.load %arg4[%c0_12, %c0_13, %c0_14] : memref<2x256x128xf32, #tpu.memory_space<vmem>>, vector<1x256x128xf32>
    %18 = vector.shape_cast %17 : vector<1x256x128xf32> to vector<256x128xf32>
    %19 = arith.subf %16, %18 : vector<256x128xf32>
    %20 = math.absf %19 : vector<256x128xf32>
    %c1 = arith.constant 1 : index
    %21 = memref.load %arg0[%c1] : memref<2xf32, #tpu.memory_space<smem>>
    %c1_15 = arith.constant 1 : index
    %c0_16 = arith.constant 0 : index
    %c0_17 = arith.constant 0 : index
    %22 = vector.load %arg2[%c1_15, %c0_16, %c0_17] : memref<2x256x128xf32, #tpu.memory_space<vmem>>, vector<1x256x128xf32>
    %23 = vector.shape_cast %22 : vector<1x256x128xf32> to vector<256x128xf32>
    %24 = vector.broadcast %21 : f32 to vector<256x128xf32>
    %25 = arith.mulf %24, %23 : vector<256x128xf32>
    %c1_18 = arith.constant 1 : index
    %26 = memref.load %arg1[%c1_18] : memref<2xf32, #tpu.memory_space<smem>>
    %c1_19 = arith.constant 1 : index
    %c0_20 = arith.constant 0 : index
    %c0_21 = arith.constant 0 : index
    %27 = vector.load %arg3[%c1_19, %c0_20, %c0_21] : memref<2x256x128xf32, #tpu.memory_space<vmem>>, vector<1x256x128xf32>
    %28 = vector.shape_cast %27 : vector<1x256x128xf32> to vector<256x128xf32>
    %29 = vector.broadcast %26 : f32 to vector<256x128xf32>
    %30 = arith.mulf %29, %28 : vector<256x128xf32>
    %31 = arith.addf %25, %30 : vector<256x128xf32>
    %cst_22 = arith.constant dense<0.000000e+00> : vector<256x128xf32>
    %32 = tpu.matmul %31, %0, %cst_22 {dimension_numbers = #tpu.dot_dimension_numbers<[1], [0], [0], [1], [0, 0, 1, 1], [], []>} : vector<256x128xf32>, vector<128x128xf32>, vector<256x128xf32> -> vector<256x128xf32>
    %c1_23 = arith.constant 1 : index
    %c0_24 = arith.constant 0 : index
    %c0_25 = arith.constant 0 : index
    %33 = vector.load %arg6[%c1_23, %c0_24, %c0_25] : memref<2x1x128xf32, #tpu.memory_space<vmem>>, vector<1x1x128xf32>
    %34 = vector.shape_cast %33 : vector<1x1x128xf32> to vector<1x128xf32>
    %35 = vector.broadcast %34 : vector<1x128xf32> to vector<256x128xf32>
    %36 = arith.addf %32, %35 : vector<256x128xf32>
    %c1_26 = arith.constant 1 : index
    %c0_27 = arith.constant 0 : index
    %c0_28 = arith.constant 0 : index
    %37 = vector.load %arg4[%c1_26, %c0_27, %c0_28] : memref<2x256x128xf32, #tpu.memory_space<vmem>>, vector<1x256x128xf32>
    %38 = vector.shape_cast %37 : vector<1x256x128xf32> to vector<256x128xf32>
    %39 = arith.subf %36, %38 : vector<256x128xf32>
    %40 = math.absf %39 : vector<256x128xf32>
    %41 = arith.addf %20, %40 : vector<256x128xf32>
    %42 = vector.shape_cast %41 : vector<256x128xf32> to vector<1x256x128xf32>
    %cst_29 = arith.constant dense<0.000000e+00> : vector<1xf32>
    %43 = vector.multi_reduction <add>, %42, %cst_29 [1, 2] : vector<1x256x128xf32> to vector<1xf32>
    %44 = vector.shape_cast %43 : vector<1xf32> to vector<1x1x1xf32>
    %45 = vector.extract %44[0, 0, 0] : f32 from vector<1x1x1xf32>
    %c0_30 = arith.constant 0 : index
    %46 = memref.load %arg7[%c0_30] : memref<1xf32, #tpu.memory_space<smem>>
    memref.store %45, %arg7[%c0_30] : memref<1xf32, #tpu.memory_space<smem>>
    return
  }
}

</mosaic_0001>

<llo_original>
// kernel: tpu_custom_call.1
$region0: #{tpu_custom_call.1}
  #allocation0 [shape = 'u32[]', space=smem, size = 0x4, offset = 0x4, fixed_abs, tag = 'smem constant byte address 0x4 - core index']
  #allocation1 [shape = 'u32[144,128]{1,0:T(1,128)}', space=vmem, size = 0x12000, scoped, tag = 'internal scratch']
  %s0 = inlined_call_operand.hbm [shape: f32[2], index: 0, kind: input, shape index: {}]
  %s1 = inlined_call_operand.vmem [shape: f32[2], index: 1, kind: input, shape index: {}]
  %s2 = inlined_call_operand.hbm [shape: f32[2,256,128], index: 2, kind: input, shape index: {}]
  %s3 = inlined_call_operand.hbm [shape: f32[2,256,128], index: 3, kind: input, shape index: {}]
  %s4 = inlined_call_operand.hbm [shape: f32[2,256,128], index: 4, kind: input, shape index: {}]
  %s5 = inlined_call_operand.hbm [shape: f32[128,128], index: 5, kind: input, shape index: {}]
  %s6 = inlined_call_operand.vmem [shape: f32[2,1,128], index: 6, kind: input, shape index: {}]
  %s7 = inlined_call_operand.hbm [shape: f32[1], index: 7, kind: output, shape index: {}]
  %s8 = sld [smem:[#allocation0]]
  $region62: #{tpu_custom_call.1} parent=0
    _
  %s10 = ssub.s32 1, %s8
  %s11 = scalar_select 0, %s10, %s8
  $region1: #{tpu_custom_call.1} parent=0
    #allocation2 [shape = 'u8[512]{0}', space=smem, size = 0x200, scoped, tag = 'input window, operand 0, single buffered']
    #allocation3 [shape = 's32[1]{0}', space=sflag, size = 0x4, scoped, tag = 'scoped memory for tpu_custom_call.1']
    #allocation4 [shape = 's32[1]{0}', space=sflag, size = 0x4, scoped, tag = 'scoped memory for tpu_custom_call.1']
    #allocation5 [shape = 's32[1]{0}', space=sflag, size = 0x4, scoped, tag = 'scoped memory for tpu_custom_call.1']
    #allocation6 [shape = 's32[1]{0}', space=sflag, size = 0x4, scoped, tag = 'scoped memory for tpu_custom_call.1']
    #allocation7 [shape = 'u8[512]{0}', space=smem, size = 0x200, scoped, tag = 'input window, operand 1, single buffered']
    #allocation8 [shape = 'u8[262144]{0}', space=vmem, size = 0x40000, scoped, tag = 'input window, operand 2, single buffered']
    #allocation9 [shape = 'u8[262144]{0}', space=vmem, size = 0x40000, scoped, tag = 'input window, operand 3, single buffered']
    #allocation10 [shape = 's32[1]{0}', space=sflag, size = 0x4, scoped, tag = 'scoped memory for tpu_custom_call.1']
    #allocation11 [shape = 'u8[262144]{0}', space=vmem, size = 0x40000, scoped, tag = 'input window, operand 4, single buffered']
    #allocation12 [shape = 'u8[65536]{0}', space=vmem, size = 0x10000, scoped, tag = 'input window, operand 5, single buffered']
    #allocation13 [shape = 's32[1]{0}', space=sflag, size = 0x4, scoped, tag = 'scoped memory for tpu_custom_call.1']
    #allocation14 [shape = 'u8[512]{0}', space=smem, size = 0x200, scoped, tag = 'output window, operand 0, single buffered']
    %12 = vsyncpa [#allocation4], 0
    %13 = vsyncpa [#allocation6], 0
    %14 = vsyncpa [#allocation3], 0
    %15 = vsyncpa [#allocation10], 0
    %16 = vsyncpa [#allocation13], 0
    %17 = vsyncpa [#allocation5], 0
    // Predicated region
    $region2: #{tpu_custom_call.1} parent=1 // pred_check
      _
    $region3: #{tpu_custom_call.1} parent=1 // pred_check_branch
      %19 = sbr.rel (0) target = $region5
    $region4: #{tpu_custom_call.1} parent=1 // pred_region
      %s21 = ssub.s32 16, 16
      %22 = vsyncadd [#allocation4], %s21
      %25 = dma.hbm_to_smem %s0, 16, [#allocation2], [#allocation4]
    $region5: #{tpu_custom_call.1} parent=1 // pred_fallthru
      _
    // Predicated region
    $region6: #{tpu_custom_call.1} parent=1 // pred_check
      _
    $region7: #{tpu_custom_call.1} parent=1 // pred_check_branch
      %27 = sbr.rel (0) target = $region9
    $region8: #{tpu_custom_call.1} parent=1 // pred_region
      %s29 = ssub.s32 16, 16
      %30 = vsyncadd [#allocation6], %s29
      %s32 = sshll.u32 %s1, 4
      %s33 = int_to_ptr.vmem [resolvable:$true] %s32
      %35 = dma.vmem_to_smem %s33, 16, [#allocation7], [#allocation6]
    $region9: #{tpu_custom_call.1} parent=1 // pred_fallthru
      _
    // Predicated region
    $region10: #{tpu_custom_call.1} parent=1 // pred_check
      _
    $region11: #{tpu_custom_call.1} parent=1 // pred_check_branch
      %37 = sbr.rel (0) target = $region13
    $region12: #{tpu_custom_call.1} parent=1 // pred_region
      %s39 = ssub.s32 8192, 8192
      %40 = vsyncadd [#allocation3], %s39
      %s41 = sshll.u32 [#allocation8], 4
      %s42 = int_to_ptr.vmem [resolvable:$true] %s41
      %47 = dma.hbm_to_vmem [thread:$0]  %s2, 8192, %s42, [#allocation3], 128, 128, 8
    $region13: #{tpu_custom_call.1} parent=1 // pred_fallthru
      _
    // Predicated region
    $region14: #{tpu_custom_call.1} parent=1 // pred_check
      _
    $region15: #{tpu_custom_call.1} parent=1 // pred_check_branch
      %49 = sbr.rel (0) target = $region17
    $region16: #{tpu_custom_call.1} parent=1 // pred_region
      %s51 = ssub.s32 8192, 8192
      %52 = vsyncadd [#allocation10], %s51
      %s53 = sshll.u32 [#allocation9], 4
      %s54 = int_to_ptr.vmem [resolvable:$true] %s53
      %59 = dma.hbm_to_vmem [thread:$0]  %s3, 8192, %s54, [#allocation10], 128, 128, 8
    $region17: #{tpu_custom_call.1} parent=1 // pred_fallthru
      _
    // Predicated region
    $region18: #{tpu_custom_call.1} parent=1 // pred_check
      _
    $region19: #{tpu_custom_call.1} parent=1 // pred_check_branch
      %61 = sbr.rel (0) target = $region21
    $region20: #{tpu_custom_call.1} parent=1 // pred_region
      %s63 = ssub.s32 8192, 8192
      %64 = vsyncadd [#allocation10], %s63
      %s65 = sshll.u32 [#allocation11], 4
      %s66 = int_to_ptr.vmem [resolvable:$true] %s65
      %71 = dma.hbm_to_vmem [thread:$0]  %s4, 8192, %s66, [#allocation10], 128, 128, 8
    $region21: #{tpu_custom_call.1} parent=1 // pred_fallthru
      _
    // Predicated region
    $region22: #{tpu_custom_call.1} parent=1 // pred_check
      _
    $region23: #{tpu_custom_call.1} parent=1 // pred_check_branch
      %73 = sbr.rel (0) target = $region25
    $region24: #{tpu_custom_call.1} parent=1 // pred_region
      %s75 = ssub.s32 2048, 2048
      %76 = vsyncadd [#allocation13], %s75
      %s77 = sshll.u32 [#allocation12], 4
      %s78 = int_to_ptr.vmem [resolvable:$true] %s77
      %83 = dma.hbm_to_vmem [thread:$0]  %s5, 2048, %s78, [#allocation13], 128, 128, 8
    $region25: #{tpu_custom_call.1} parent=1 // pred_fallthru
      _
    // Predicated region
    $region26: #{tpu_custom_call.1} parent=1 // pred_check
      _
    $region27: #{tpu_custom_call.1} parent=1 // pred_check_branch
      %85 = sbr.rel (0) target = $region29
    $region28: #{tpu_custom_call.1} parent=1 // pred_region
      _
    $region29: #{tpu_custom_call.1} parent=1 // pred_fallthru
      _
    // Predicated region
    $region30: #{tpu_custom_call.1} parent=1 // pred_check
      _
    $region31: #{tpu_custom_call.1} parent=1 // pred_check_branch
      %87 = sbr.rel (0) target = $region33
    $region32: #{tpu_custom_call.1} parent=1 // pred_region
      %88 = dma.done [#allocation4], 16
    $region33: #{tpu_custom_call.1} parent=1 // pred_fallthru
      _
    // Predicated region
    $region34: #{tpu_custom_call.1} parent=1 // pred_check
      _
    $region35: #{tpu_custom_call.1} parent=1 // pred_check_branch
      %90 = sbr.rel (0) target = $region37
    $region36: #{tpu_custom_call.1} parent=1 // pred_region
      %91 = dma.done [#allocation6], 16
    $region37: #{tpu_custom_call.1} parent=1 // pred_fallthru
      _
    // Predicated region
    $region38: #{tpu_custom_call.1} parent=1 // pred_check
      _
    $region39: #{tpu_custom_call.1} parent=1 // pred_check_branch
      %93 = sbr.rel (0) target = $region41
    $region40: #{tpu_custom_call.1} parent=1 // pred_region
      %94 = dma.done [#allocation3], 8192
    $region41: #{tpu_custom_call.1} parent=1 // pred_fallthru
      _
    // Predicated region
    $region42: #{tpu_custom_call.1} parent=1 // pred_check
      _
    $region43: #{tpu_custom_call.1} parent=1 // pred_check_branch
      %96 = sbr.rel (0) target = $region45
    $region44: #{tpu_custom_call.1} parent=1 // pred_region
      %97 = dma.done [#allocation10], 8192
    $region45: #{tpu_custom_call.1} parent=1 // pred_fallthru
      _
    // Predicated region
    $region46: #{tpu_custom_call.1} parent=1 // pred_check
      _
    $region47: #{tpu_custom_call.1} parent=1 // pred_check_branch
      %99 = sbr.rel (0) target = $region49
    $region48: #{tpu_custom_call.1} parent=1 // pred_region
      %100 = dma.done [#allocation10], 8192
    $region49: #{tpu_custom_call.1} parent=1 // pred_fallthru
      _
    // Predicated region
    $region50: #{tpu_custom_call.1} parent=1 // pred_check
      _
    $region51: #{tpu_custom_call.1} parent=1 // pred_check_branch
      %102 = sbr.rel (0) target = $region53
    $region52: #{tpu_custom_call.1} parent=1 // pred_region
      %103 = dma.done [#allocation13], 2048
    $region53: #{tpu_custom_call.1} parent=1 // pred_fallthru
      _
    %104 = sfence
    %v105 = vld [vmem:[#allocation12] sm:$0xff]
    %v106 = vld [vmem:[#allocation12 + $0x8] sm:$0xff]
    %v107 = vld [vmem:[#allocation12 + $0x10] sm:$0xff]
    %v108 = vld [vmem:[#allocation12 + $0x18] sm:$0xff]
    %v109 = vld [vmem:[#allocation12 + $0x20] sm:$0xff]
    %v110 = vld [vmem:[#allocation12 + $0x28] sm:$0xff]
    %v111 = vld [vmem:[#allocation12 + $0x30] sm:$0xff]
    %v112 = vld [vmem:[#allocation12 + $0x38] sm:$0xff]
    %v113 = vld [vmem:[#allocation12 + $0x40] sm:$0xff]
    %v114 = vld [vmem:[#allocation12 + $0x48] sm:$0xff]
    %v115 = vld [vmem:[#allocation12 + $0x50] sm:$0xff]
    %v116 = vld [vmem:[#allocation12 + $0x58] sm:$0xff]
    %v117 = vld [vmem:[#allocation12 + $0x60] sm:$0xff]
    %v118 = vld [vmem:[#allocation12 + $0x68] sm:$0xff]
    %v119 = vld [vmem:[#allocation12 + $0x70] sm:$0xff]
    %v120 = vld [vmem:[#allocation12 + $0x78] sm:$0xff]
    %s121 = sld [smem:[#allocation2]]
    %v122 = vld [vmem:[#allocation8] sm:$0xff]
    %v123 = vld [vmem:[#allocation8 + $0x8] sm:$0xff]
    %v124 = vld [vmem:[#allocation8 + $0x10] sm:$0xff]
    %v125 = vld [vmem:[#allocation8 + $0x18] sm:$0xff]
    %v126 = vld [vmem:[#allocation8 + $0x20] sm:$0xff]
    %v127 = vld [vmem:[#allocation8 + $0x28] sm:$0xff]
    %v128 = vld [vmem:[#allocation8 + $0x30] sm:$0xff]
    %v129 = vld [vmem:[#allocation8 + $0x38] sm:$0xff]
    %v130 = vld [vmem:[#allocation8 + $0x40] sm:$0xff]
    %v131 = vld [vmem:[#allocation8 + $0x48] sm:$0xff]
    %v132 = vld [vmem:[#allocation8 + $0x50] sm:$0xff]
    %v133 = vld [vmem:[#allocation8 + $0x58] sm:$0xff]
    %v134 = vld [vmem:[#allocation8 + $0x60] sm:$0xff]
    %v135 = vld [vmem:[#allocation8 + $0x68] sm:$0xff]
    %v136 = vld [vmem:[#allocation8 + $0x70] sm:$0xff]
    %v137 = vld [vmem:[#allocation8 + $0x78] sm:$0xff]
    %v138 = vld [vmem:[#allocation8 + $0x80] sm:$0xff]
    %v139 = vld [vmem:[#allocation8 + $0x88] sm:$0xff]
    %v140 = vld [vmem:[#allocation8 + $0x90] sm:$0xff]
    %v141 = vld [vmem:[#allocation8 + $0x98] sm:$0xff]
    %v142 = vld [vmem:[#allocation8 + $0xa0] sm:$0xff]
    %v143 = vld [vmem:[#allocation8 + $0xa8] sm:$0xff]
    %v144 = vld [vmem:[#allocation8 + $0xb0] sm:$0xff]
    %v145 = vld [vmem:[#allocation8 + $0xb8] sm:$0xff]
    %v146 = vld [vmem:[#allocation8 + $0xc0] sm:$0xff]
    %v147 = vld [vmem:[#allocation8 + $0xc8] sm:$0xff]
    %v148 = vld [vmem:[#allocation8 + $0xd0] sm:$0xff]
    %v149 = vld [vmem:[#allocation8 + $0xd8] sm:$0xff]
    %v150 = vld [vmem:[#allocation8 + $0xe0] sm:$0xff]
    %v151 = vld [vmem:[#allocation8 + $0xe8] sm:$0xff]
    %v152 = vld [vmem:[#allocation8 + $0xf0] sm:$0xff]
    %v153 = vld [vmem:[#allocation8 + $0xf8] sm:$0xff]
    %v154 = vstv %s121
    %v155 = vmul.f32 %v154, %v122
    %v156 = vmul.f32 %v154, %v123
    %v157 = vmul.f32 %v154, %v124
    %v158 = vmul.f32 %v154, %v125
    %v159 = vmul.f32 %v154, %v126
    %v160 = vmul.f32 %v154, %v127
    %v161 = vmul.f32 %v154, %v128
    %v162 = vmul.f32 %v154, %v129
    %v163 = vmul.f32 %v154, %v130
    %v164 = vmul.f32 %v154, %v131
    %v165 = vmul.f32 %v154, %v132
    %v166 = vmul.f32 %v154, %v133
    %v167 = vmul.f32 %v154, %v134
    %v168 = vmul.f32 %v154, %v135
    %v169 = vmul.f32 %v154, %v136
    %v170 = vmul.f32 %v154, %v137
    %v171 = vmul.f32 %v154, %v138
    %v172 = vmul.f32 %v154, %v139
    %v173 = vmul.f32 %v154, %v140
    %v174 = vmul.f32 %v154, %v141
    %v175 = vmul.f32 %v154, %v142
    %v176 = vmul.f32 %v154, %v143
    %v177 = vmul.f32 %v154, %v144
    %v178 = vmul.f32 %v154, %v145
    %v179 = vmul.f32 %v154, %v146
    %v180 = vmul.f32 %v154, %v147
    %v181 = vmul.f32 %v154, %v148
    %v182 = vmul.f32 %v154, %v149
    %v183 = vmul.f32 %v154, %v150
    %v184 = vmul.f32 %v154, %v151
    %v185 = vmul.f32 %v154, %v152
    %v186 = vmul.f32 %v154, %v153
    %s187 = sld [smem:[#allocation7]]
    %v188 = vld [vmem:[#allocation9] sm:$0xff]
    %v189 = vld [vmem:[#allocation9 + $0x8] sm:$0xff]
    %v190 = vld [vmem:[#allocation9 + $0x10] sm:$0xff]
    %v191 = vld [vmem:[#allocation9 + $0x18] sm:$0xff]
    %v192 = vld [vmem:[#allocation9 + $0x20] sm:$0xff]
    %v193 = vld [vmem:[#allocation9 + $0x28] sm:$0xff]
    %v194 = vld [vmem:[#allocation9 + $0x30] sm:$0xff]
    %v195 = vld [vmem:[#allocation9 + $0x38] sm:$0xff]
    %v196 = vld [vmem:[#allocation9 + $0x40] sm:$0xff]
    %v197 = vld [vmem:[#allocation9 + $0x48] sm:$0xff]
    %v198 = vld [vmem:[#allocation9 + $0x50] sm:$0xff]
    %v199 = vld [vmem:[#allocation9 + $0x58] sm:$0xff]
    %v200 = vld [vmem:[#allocation9 + $0x60] sm:$0xff]
    %v201 = vld [vmem:[#allocation9 + $0x68] sm:$0xff]
    %v202 = vld [vmem:[#allocation9 + $0x70] sm:$0xff]
    %v203 = vld [vmem:[#allocation9 + $0x78] sm:$0xff]
    %v204 = vld [vmem:[#allocation9 + $0x80] sm:$0xff]
    %v205 = vld [vmem:[#allocation9 + $0x88] sm:$0xff]
    %v206 = vld [vmem:[#allocation9 + $0x90] sm:$0xff]
    %v207 = vld [vmem:[#allocation9 + $0x98] sm:$0xff]
    %v208 = vld [vmem:[#allocation9 + $0xa0] sm:$0xff]
    %v209 = vld [vmem:[#allocation9 + $0xa8] sm:$0xff]
    %v210 = vld [vmem:[#allocation9 + $0xb0] sm:$0xff]
    %v211 = vld [vmem:[#allocation9 + $0xb8] sm:$0xff]
    %v212 = vld [vmem:[#allocation9 + $0xc0] sm:$0xff]
    %v213 = vld [vmem:[#allocation9 + $0xc8] sm:$0xff]
    %v214 = vld [vmem:[#allocation9 + $0xd0] sm:$0xff]
    %v215 = vld [vmem:[#allocation9 + $0xd8] sm:$0xff]
    %v216 = vld [vmem:[#allocation9 + $0xe0] sm:$0xff]
    %v217 = vld [vmem:[#allocation9 + $0xe8] sm:$0xff]
    %v218 = vld [vmem:[#allocation9 + $0xf0] sm:$0xff]
    %v219 = vld [vmem:[#allocation9 + $0xf8] sm:$0xff]
    %v220 = vstv %s187
    %v221 = vmul.f32 %v220, %v188
    %v222 = vmul.f32 %v220, %v189
    %v223 = vmul.f32 %v220, %v190
    %v224 = vmul.f32 %v220, %v191
    %v225 = vmul.f32 %v220, %v192
    %v226 = vmul.f32 %v220, %v193
    %v227 = vmul.f32 %v220, %v194
    %v228 = vmul.f32 %v220, %v195
    %v229 = vmul.f32 %v220, %v196
    %v230 = vmul.f32 %v220, %v197
    %v231 = vmul.f32 %v220, %v198
    %v232 = vmul.f32 %v220, %v199
    %v233 = vmul.f32 %v220, %v200
    %v234 = vmul.f32 %v220, %v201
    %v235 = vmul.f32 %v220, %v202
    %v236 = vmul.f32 %v220, %v203
    %v237 = vmul.f32 %v220, %v204
    %v238 = vmul.f32 %v220, %v205
    %v239 = vmul.f32 %v220, %v206
    %v240 = vmul.f32 %v220, %v207
    %v241 = vmul.f32 %v220, %v208
    %v242 = vmul.f32 %v220, %v209
    %v243 = vmul.f32 %v220, %v210
    %v244 = vmul.f32 %v220, %v211
    %v245 = vmul.f32 %v220, %v212
    %v246 = vmul.f32 %v220, %v213
    %v247 = vmul.f32 %v220, %v214
    %v248 = vmul.f32 %v220, %v215
    %v249 = vmul.f32 %v220, %v216
    %v250 = vmul.f32 %v220, %v217
    %v251 = vmul.f32 %v220, %v218
    %v252 = vmul.f32 %v220, %v219
    %v253 = vadd.f32 %v155, %v221
    %v254 = vadd.f32 %v156, %v222
    %v255 = vadd.f32 %v157, %v223
    %v256 = vadd.f32 %v158, %v224
    %v257 = vadd.f32 %v159, %v225
    %v258 = vadd.f32 %v160, %v226
    %v259 = vadd.f32 %v161, %v227
    %v260 = vadd.f32 %v162, %v228
    %v261 = vadd.f32 %v163, %v229
    %v262 = vadd.f32 %v164, %v230
    %v263 = vadd.f32 %v165, %v231
    %v264 = vadd.f32 %v166, %v232
    %v265 = vadd.f32 %v167, %v233
    %v266 = vadd.f32 %v168, %v234
    %v267 = vadd.f32 %v169, %v235
    %v268 = vadd.f32 %v170, %v236
    %v269 = vadd.f32 %v171, %v237
    %v270 = vadd.f32 %v172, %v238
    %v271 = vadd.f32 %v173, %v239
    %v272 = vadd.f32 %v174, %v240
    %v273 = vadd.f32 %v175, %v241
    %v274 = vadd.f32 %v176, %v242
    %v275 = vadd.f32 %v177, %v243
    %v276 = vadd.f32 %v178, %v244
    %v277 = vadd.f32 %v179, %v245
    %v278 = vadd.f32 %v180, %v246
    %v279 = vadd.f32 %v181, %v247
    %v280 = vadd.f32 %v182, %v248
    %v281 = vadd.f32 %v183, %v249
    %v282 = vadd.f32 %v184, %v250
    %v283 = vadd.f32 %v185, %v251
    %v284 = vadd.f32 %v186, %v252
    %v285 = vld [vmem:[%s6] sm:$0x1]
    %v287 = vlaneseq
    %v288 = vshrl.u32 %v287, 7
    %v289 = vsub.s32 0, %v288
    %v290 = vrot.slane %v285, %v289
    %292 = vmatprep.subr.mxu0 0.0
    %293 = vmatpush1.msra.mxu0 %v105
    %294 = vmatprep.subr.mxu0 0.0
    %295 = vmatpush1.msra.mxu0 %v106
    %296 = vmatprep.subr.mxu0 0.0
    %297 = vmatpush1.msra.mxu0 %v107
    %298 = vmatprep.subr.mxu0 0.0
    %299 = vmatpush1.msra.mxu0 %v108
    %300 = vmatprep.subr.mxu0 0.0
    %301 = vmatpush1.msra.mxu0 %v109
    %302 = vmatprep.subr.mxu0 0.0
    %303 = vmatpush1.msra.mxu0 %v110
    %304 = vmatprep.subr.mxu0 0.0
    %305 = vmatpush1.msra.mxu0 %v111
    %306 = vmatprep.subr.mxu0 0.0
    %307 = vmatpush1.msra.mxu0 %v112
    %308 = vmatprep.subr.mxu0 0.0
    %309 = vmatpush1.msra.mxu0 %v113
    %310 = vmatprep.subr.mxu0 0.0
    %311 = vmatpush1.msra.mxu0 %v114
    %312 = vmatprep.subr.mxu0 0.0
    %313 = vmatpush1.msra.mxu0 %v115
    %314 = vmatprep.subr.mxu0 0.0
    %315 = vmatpush1.msra.mxu0 %v116
    %316 = vmatprep.subr.mxu0 0.0
    %317 = vmatpush1.msra.mxu0 %v117
    %318 = vmatprep.subr.mxu0 0.0
    %319 = vmatpush1.msra.mxu0 %v118
    %320 = vmatprep.subr.mxu0 0.0
    %321 = vmatpush1.msra.mxu0 %v119
    %322 = vmatprep.subr.mxu0 0.0
    %323 = vmatpush1.msra.mxu0 %v120
    %324 = vmatprep.subr.mxu0 0.0
    %325 = vmatpush1.msra.mxu0 0.0
    %326 = vmatprep.subr.mxu0 0.0
    %327 = vmatpush1.msra.mxu0 0.0
    %328 = vmatprep.subr.mxu0 0.0
    %329 = vmatpush1.msra.mxu0 0.0
    %330 = vmatprep.subr.mxu0 0.0
    %331 = vmatpush1.msra.mxu0 0.0
    %332 = vmatprep.subr.mxu0 0.0
    %333 = vmatpush1.msra.mxu0 0.0
    %334 = vmatprep.subr.mxu0 0.0
    %335 = vmatpush1.msra.mxu0 0.0
    %336 = vmatprep.subr.mxu0 0.0
    %337 = vmatpush1.msra.mxu0 0.0
    %338 = vmatprep.subr.mxu0 0.0
    %339 = vmatpush1.msra.mxu0 0.0
    %340 = vmatprep.subr.mxu0 0.0
    %341 = vmatpush1.msra.mxu0 0.0
    %342 = vmatprep.subr.mxu0 0.0
    %343 = vmatpush1.msra.mxu0 0.0
    %344 = vmatprep.subr.mxu0 0.0
    %345 = vmatpush1.msra.mxu0 0.0
    %346 = vmatprep.subr.mxu0 0.0
    %347 = vmatpush1.msra.mxu0 0.0
    %348 = vmatprep.subr.mxu0 0.0
    %349 = vmatpush1.msra.mxu0 0.0
    %350 = vmatprep.subr.mxu0 0.0
    %351 = vmatpush1.msra.mxu0 0.0
    %352 = vmatprep.subr.mxu0 0.0
    %353 = vmatpush1.msra.mxu0 0.0
    %354 = vmatprep.subr.mxu0 0.0
    %355 = vmatpush1.msra.mxu0 0.0
    %356 = vmatprep.mubr.f32.mxu0 0.0
    %357 = vmatmul.mubr.f32.gmra.mrb[0].mxu0 %v253
    %v358 = vpop.f32.mrb[0].mxu0
    %v359 = vadd.f32 %v290, %v358
    %v360 = vpop.f32.mrb[0].mxu0
    %361 = vmatprep.mubr.f32.mxu0 0.0
    %362 = vmatmul.mubr.f32.gmra.mrb[0].mxu0 %v254
    %v363 = vpop.f32.mrb[0].mxu0
    %v364 = vadd.f32 %v290, %v363
    %v365 = vpop.f32.mrb[0].mxu0
    %366 = vmatprep.mubr.f32.mxu0 0.0
    %367 = vmatmul.mubr.f32.gmra.mrb[0].mxu0 %v255
    %v368 = vpop.f32.mrb[0].mxu0
    %v369 = vadd.f32 %v290, %v368
    %v370 = vpop.f32.mrb[0].mxu0
    %371 = vmatprep.mubr.f32.mxu0 0.0
    %372 = vmatmul.mubr.f32.gmra.mrb[0].mxu0 %v256
    %v373 = vpop.f32.mrb[0].mxu0
    %v374 = vadd.f32 %v290, %v373
    %v375 = vpop.f32.mrb[0].mxu0
    %376 = vmatprep.mubr.f32.mxu0 0.0
    %377 = vmatmul.mubr.f32.gmra.mrb[0].mxu0 %v257
    %v378 = vpop.f32.mrb[0].mxu0
    %v379 = vadd.f32 %v290, %v378
    %v380 = vpop.f32.mrb[0].mxu0
    %381 = vmatprep.mubr.f32.mxu0 0.0
    %382 = vmatmul.mubr.f32.gmra.mrb[0].mxu0 %v258
    %v383 = vpop.f32.mrb[0].mxu0
    %v384 = vadd.f32 %v290, %v383
    %v385 = vpop.f32.mrb[0].mxu0
    %386 = vmatprep.mubr.f32.mxu0 0.0
    %387 = vmatmul.mubr.f32.gmra.mrb[0].mxu0 %v259
    %v388 = vpop.f32.mrb[0].mxu0
    %v389 = vadd.f32 %v290, %v388
    %v390 = vpop.f32.mrb[0].mxu0
    %391 = vmatprep.mubr.f32.mxu0 0.0
    %392 = vmatmul.mubr.f32.gmra.mrb[0].mxu0 %v260
    %v393 = vpop.f32.mrb[0].mxu0
    %v394 = vadd.f32 %v290, %v393
    %v395 = vpop.f32.mrb[0].mxu0
    %396 = vmatprep.mubr.f32.mxu0 0.0
    %397 = vmatmul.mubr.f32.gmra.mrb[0].mxu0 %v261
    %v398 = vpop.f32.mrb[0].mxu0
    %v399 = vadd.f32 %v290, %v398
    %v400 = vpop.f32.mrb[0].mxu0
    %401 = vmatprep.mubr.f32.mxu0 0.0
    %402 = vmatmul.mubr.f32.gmra.mrb[0].mxu0 %v262
    %v403 = vpop.f32.mrb[0].mxu0
    %v404 = vadd.f32 %v290, %v403
    %v405 = vpop.f32.mrb[0].mxu0
    %406 = vmatprep.mubr.f32.mxu0 0.0
    %407 = vmatmul.mubr.f32.gmra.mrb[0].mxu0 %v263
    %v408 = vpop.f32.mrb[0].mxu0
    %v409 = vadd.f32 %v290, %v408
    %v410 = vpop.f32.mrb[0].mxu0
    %411 = vmatprep.mubr.f32.mxu0 0.0
    %412 = vmatmul.mubr.f32.gmra.mrb[0].mxu0 %v264
    %v413 = vpop.f32.mrb[0].mxu0
    %v414 = vadd.f32 %v290, %v413
    %v415 = vpop.f32.mrb[0].mxu0
    %416 = vmatprep.mubr.f32.mxu0 0.0
    %417 = vmatmul.mubr.f32.gmra.mrb[0].mxu0 %v265
    %v418 = vpop.f32.mrb[0].mxu0
    %v419 = vadd.f32 %v290, %v418
    %v420 = vpop.f32.mrb[0].mxu0
    %421 = vmatprep.mubr.f32.mxu0 0.0
    %422 = vmatmul.mubr.f32.gmra.mrb[0].mxu0 %v266
    %v423 = vpop.f32.mrb[0].mxu0
    %v424 = vadd.f32 %v290, %v423
    %v425 = vpop.f32.mrb[0].mxu0
    %426 = vmatprep.mubr.f32.mxu0 0.0
    %427 = vmatmul.mubr.f32.gmra.mrb[0].mxu0 %v267
    %v428 = vpop.f32.mrb[0].mxu0
    %v429 = vadd.f32 %v290, %v428
    %v430 = vpop.f32.mrb[0].mxu0
    %431 = vmatprep.mubr.f32.mxu0 0.0
    %432 = vmatmul.mubr.f32.gmra.mrb[0].mxu0 %v268
    %v433 = vpop.f32.mrb[0].mxu0
    %v434 = vadd.f32 %v290, %v433
    %v435 = vpop.f32.mrb[0].mxu0
    %436 = vmatprep.mubr.f32.mxu0 0.0
    %437 = vmatmul.mubr.f32.gmra.mrb[0].mxu0 %v269
    %v438 = vpop.f32.mrb[0].mxu0
    %v439 = vadd.f32 %v290, %v438
    %v440 = vpop.f32.mrb[0].mxu0
    %441 = vmatprep.mubr.f32.mxu0 0.0
    %442 = vmatmul.mubr.f32.gmra.mrb[0].mxu0 %v270
    %v443 = vpop.f32.mrb[0].mxu0
    %v444 = vadd.f32 %v290, %v443
    %v445 = vpop.f32.mrb[0].mxu0
    %446 = vmatprep.mubr.f32.mxu0 0.0
    %447 = vmatmul.mubr.f32.gmra.mrb[0].mxu0 %v271
    %v448 = vpop.f32.mrb[0].mxu0
    %v449 = vadd.f32 %v290, %v448
    %v450 = vpop.f32.mrb[0].mxu0
    %451 = vmatprep.mubr.f32.mxu0 0.0
    %452 = vmatmul.mubr.f32.gmra.mrb[0].mxu0 %v272
    %v453 = vpop.f32.mrb[0].mxu0
    %v454 = vadd.f32 %v290, %v453
    %v455 = vpop.f32.mrb[0].mxu0
    %456 = vmatprep.mubr.f32.mxu0 0.0
    %457 = vmatmul.mubr.f32.gmra.mrb[0].mxu0 %v273
    %v458 = vpop.f32.mrb[0].mxu0
    %v459 = vadd.f32 %v290, %v458
    %v460 = vpop.f32.mrb[0].mxu0
    %461 = vmatprep.mubr.f32.mxu0 0.0
    %462 = vmatmul.mubr.f32.gmra.mrb[0].mxu0 %v274
    %v463 = vpop.f32.mrb[0].mxu0
    %v464 = vadd.f32 %v290, %v463
    %v465 = vpop.f32.mrb[0].mxu0
    %466 = vmatprep.mubr.f32.mxu0 0.0
    %467 = vmatmul.mubr.f32.gmra.mrb[0].mxu0 %v275
    %v468 = vpop.f32.mrb[0].mxu0
    %v469 = vadd.f32 %v290, %v468
    %v470 = vpop.f32.mrb[0].mxu0
    %471 = vmatprep.mubr.f32.mxu0 0.0
    %472 = vmatmul.mubr.f32.gmra.mrb[0].mxu0 %v276
    %v473 = vpop.f32.mrb[0].mxu0
    %v474 = vadd.f32 %v290, %v473
    %v475 = vpop.f32.mrb[0].mxu0
    %476 = vmatprep.mubr.f32.mxu0 0.0
    %477 = vmatmul.mubr.f32.gmra.mrb[0].mxu0 %v277
    %v478 = vpop.f32.mrb[0].mxu0
    %v479 = vadd.f32 %v290, %v478
    %v480 = vpop.f32.mrb[0].mxu0
    %481 = vmatprep.mubr.f32.mxu0 0.0
    %482 = vmatmul.mubr.f32.gmra.mrb[0].mxu0 %v278
    %v483 = vpop.f32.mrb[0].mxu0
    %v484 = vadd.f32 %v290, %v483
    %v485 = vpop.f32.mrb[0].mxu0
    %486 = vmatprep.mubr.f32.mxu0 0.0
    %487 = vmatmul.mubr.f32.gmra.mrb[0].mxu0 %v279
    %v488 = vpop.f32.mrb[0].mxu0
    %v489 = vadd.f32 %v290, %v488
    %v490 = vpop.f32.mrb[0].mxu0
    %491 = vmatprep.mubr.f32.mxu0 0.0
    %492 = vmatmul.mubr.f32.gmra.mrb[0].mxu0 %v280
    %v493 = vpop.f32.mrb[0].mxu0
    %v494 = vadd.f32 %v290, %v493
    %v495 = vpop.f32.mrb[0].mxu0
    %496 = vmatprep.mubr.f32.mxu0 0.0
    %497 = vmatmul.mubr.f32.gmra.mrb[0].mxu0 %v281
    %v498 = vpop.f32.mrb[0].mxu0
    %v499 = vadd.f32 %v290, %v498
    %v500 = vpop.f32.mrb[0].mxu0
    %501 = vmatprep.mubr.f32.mxu0 0.0
    %502 = vmatmul.mubr.f32.gmra.mrb[0].mxu0 %v282
    %v503 = vpop.f32.mrb[0].mxu0
    %v504 = vadd.f32 %v290, %v503
    %v505 = vpop.f32.mrb[0].mxu0
    %506 = vmatprep.mubr.f32.mxu0 0.0
    %507 = vmatmul.mubr.f32.gmra.mrb[0].mxu0 %v283
    %v508 = vpop.f32.mrb[0].mxu0
    %v509 = vadd.f32 %v290, %v508
    %v510 = vpop.f32.mrb[0].mxu0
    %511 = vmatprep.mubr.f32.mxu0 0.0
    %512 = vmatmul.mubr.f32.gmra.mrb[0].mxu0 %v284
    %v513 = vpop.f32.mrb[0].mxu0
    %v514 = vadd.f32 %v290, %v513
    %v515 = vpop.f32.mrb[0].mxu0
    %516 = vdwg.mxu0
    %v517 = vld [vmem:[#allocation11] sm:$0xff]
    %v518 = vld [vmem:[#allocation11 + $0x8] sm:$0xff]
    %v519 = vld [vmem:[#allocation11 + $0x10] sm:$0xff]
    %v520 = vld [vmem:[#allocation11 + $0x18] sm:$0xff]
    %v521 = vld [vmem:[#allocation11 + $0x20] sm:$0xff]
    %v522 = vld [vmem:[#allocation11 + $0x28] sm:$0xff]
    %v523 = vld [vmem:[#allocation11 + $0x30] sm:$0xff]
    %v524 = vld [vmem:[#allocation11 + $0x38] sm:$0xff]
    %v525 = vld [vmem:[#allocation11 + $0x40] sm:$0xff]
    %v526 = vld [vmem:[#allocation11 + $0x48] sm:$0xff]
    %v527 = vld [vmem:[#allocation11 + $0x50] sm:$0xff]
    %v528 = vld [vmem:[#allocation11 + $0x58] sm:$0xff]
    %v529 = vld [vmem:[#allocation11 + $0x60] sm:$0xff]
    %v530 = vld [vmem:[#allocation11 + $0x68] sm:$0xff]
    %v531 = vld [vmem:[#allocation11 + $0x70] sm:$0xff]
    %v532 = vld [vmem:[#allocation11 + $0x78] sm:$0xff]
    %v533 = vld [vmem:[#allocation11 + $0x80] sm:$0xff]
    %v534 = vld [vmem:[#allocation11 + $0x88] sm:$0xff]
    %v535 = vld [vmem:[#allocation11 + $0x90] sm:$0xff]
    %v536 = vld [vmem:[#allocation11 + $0x98] sm:$0xff]
    %v537 = vld [vmem:[#allocation11 + $0xa0] sm:$0xff]
    %v538 = vld [vmem:[#allocation11 + $0xa8] sm:$0xff]
    %v539 = vld [vmem:[#allocation11 + $0xb0] sm:$0xff]
    %v540 = vld [vmem:[#allocation11 + $0xb8] sm:$0xff]
    %v541 = vld [vmem:[#allocation11 + $0xc0] sm:$0xff]
    %v542 = vld [vmem:[#allocation11 + $0xc8] sm:$0xff]
    %v543 = vld [vmem:[#allocation11 + $0xd0] sm:$0xff]
    %v544 = vld [vmem:[#allocation11 + $0xd8] sm:$0xff]
    %v545 = vld [vmem:[#allocation11 + $0xe0] sm:$0xff]
    %v546 = vld [vmem:[#allocation11 + $0xe8] sm:$0xff]
    %v547 = vld [vmem:[#allocation11 + $0xf0] sm:$0xff]
    %v548 = vld [vmem:[#allocation11 + $0xf8] sm:$0xff]
    %v549 = vsub.f32 %v359, %v517
    %v550 = vsub.f32 %v364, %v518
    %v551 = vsub.f32 %v369, %v519
    %v552 = vsub.f32 %v374, %v520
    %v553 = vsub.f32 %v379, %v521
    %v554 = vsub.f32 %v384, %v522
    %v555 = vsub.f32 %v389, %v523
    %v556 = vsub.f32 %v394, %v524
    %v557 = vsub.f32 %v399, %v525
    %v558 = vsub.f32 %v404, %v526
    %v559 = vsub.f32 %v409, %v527
    %v560 = vsub.f32 %v414, %v528
    %v561 = vsub.f32 %v419, %v529
    %v562 = vsub.f32 %v424, %v530
    %v563 = vsub.f32 %v429, %v531
    %v564 = vsub.f32 %v434, %v532
    %v565 = vsub.f32 %v439, %v533
    %v566 = vsub.f32 %v444, %v534
    %v567 = vsub.f32 %v449, %v535
    %v568 = vsub.f32 %v454, %v536
    %v569 = vsub.f32 %v459, %v537
    %v570 = vsub.f32 %v464, %v538
    %v571 = vsub.f32 %v469, %v539
    %v572 = vsub.f32 %v474, %v540
    %v573 = vsub.f32 %v479, %v541
    %v574 = vsub.f32 %v484, %v542
    %v575 = vsub.f32 %v489, %v543
    %v576 = vsub.f32 %v494, %v544
    %v577 = vsub.f32 %v499, %v545
    %v578 = vsub.f32 %v504, %v546
    %v579 = vsub.f32 %v509, %v547
    %v580 = vsub.f32 %v514, %v548
    %v581 = vand.u32 2147483647, %v549
    %v582 = vand.u32 2147483647, %v550
    %v583 = vand.u32 2147483647, %v551
    %v584 = vand.u32 2147483647, %v552
    %v585 = vand.u32 2147483647, %v553
    %v586 = vand.u32 2147483647, %v554
    %v587 = vand.u32 2147483647, %v555
    %v588 = vand.u32 2147483647, %v556
    %v589 = vand.u32 2147483647, %v557
    %v590 = vand.u32 2147483647, %v558
    %v591 = vand.u32 2147483647, %v559
    %v592 = vand.u32 2147483647, %v560
    %v593 = vand.u32 2147483647, %v561
    %v594 = vand.u32 2147483647, %v562
    %v595 = vand.u32 2147483647, %v563
    %v596 = vand.u32 2147483647, %v564
    %v597 = vand.u32 2147483647, %v565
    %v598 = vand.u32 2147483647, %v566
    %v599 = vand.u32 2147483647, %v567
    %v600 = vand.u32 2147483647, %v568
    %v601 = vand.u32 2147483647, %v569
    %v602 = vand.u32 2147483647, %v570
    %v603 = vand.u32 2147483647, %v571
    %v604 = vand.u32 2147483647, %v572
    %v605 = vand.u32 2147483647, %v573
    %v606 = vand.u32 2147483647, %v574
    %v607 = vand.u32 2147483647, %v575
    %v608 = vand.u32 2147483647, %v576
    %v609 = vand.u32 2147483647, %v577
    %v610 = vand.u32 2147483647, %v578
    %v611 = vand.u32 2147483647, %v579
    %v612 = vand.u32 2147483647, %v580
    %s613 = sld [smem:[#allocation2 + $0x1]]
    %s614 = scalar_lea.vmem [#allocation8], 256
    %v615 = vld [vmem:[%s614] sm:$0xff]
    %v616 = vld [vmem:[%s614 + $0x8] sm:$0xff]
    %v617 = vld [vmem:[%s614 + $0x10] sm:$0xff]
    %v618 = vld [vmem:[%s614 + $0x18] sm:$0xff]
    %v619 = vld [vmem:[%s614 + $0x20] sm:$0xff]
    %v620 = vld [vmem:[%s614 + $0x28] sm:$0xff]
    %v621 = vld [vmem:[%s614 + $0x30] sm:$0xff]
    %v622 = vld [vmem:[%s614 + $0x38] sm:$0xff]
    %v623 = vld [vmem:[%s614 + $0x40] sm:$0xff]
    %v624 = vld [vmem:[%s614 + $0x48] sm:$0xff]
    %v625 = vld [vmem:[%s614 + $0x50] sm:$0xff]
    %v626 = vld [vmem:[%s614 + $0x58] sm:$0xff]
    %v627 = vld [vmem:[%s614 + $0x60] sm:$0xff]
    %v628 = vld [vmem:[%s614 + $0x68] sm:$0xff]
    %v629 = vld [vmem:[%s614 + $0x70] sm:$0xff]
    %v630 = vld [vmem:[%s614 + $0x78] sm:$0xff]
    %v631 = vld [vmem:[%s614 + $0x80] sm:$0xff]
    %v632 = vld [vmem:[%s614 + $0x88] sm:$0xff]
    %v633 = vld [vmem:[%s614 + $0x90] sm:$0xff]
    %v634 = vld [vmem:[%s614 + $0x98] sm:$0xff]
    %v635 = vld [vmem:[%s614 + $0xa0] sm:$0xff]
    %v636 = vld [vmem:[%s614 + $0xa8] sm:$0xff]
    %v637 = vld [vmem:[%s614 + $0xb0] sm:$0xff]
    %v638 = vld [vmem:[%s614 + $0xb8] sm:$0xff]
    %v639 = vld [vmem:[%s614 + $0xc0] sm:$0xff]
    %v640 = vld [vmem:[%s614 + $0xc8] sm:$0xff]
    %v641 = vld [vmem:[%s614 + $0xd0] sm:$0xff]
    %v642 = vld [vmem:[%s614 + $0xd8] sm:$0xff]
    %v643 = vld [vmem:[%s614 + $0xe0] sm:$0xff]
    %v644 = vld [vmem:[%s614 + $0xe8] sm:$0xff]
    %v645 = vld [vmem:[%s614 + $0xf0] sm:$0xff]
    %v646 = vld [vmem:[%s614 + $0xf8] sm:$0xff]
    %v647 = vstv %s613
    %v648 = vmul.f32 %v647, %v615
    %v649 = vmul.f32 %v647, %v616
    %v650 = vmul.f32 %v647, %v617
    %v651 = vmul.f32 %v647, %v618
    %v652 = vmul.f32 %v647, %v619
    %v653 = vmul.f32 %v647, %v620
    %v654 = vmul.f32 %v647, %v621
    %v655 = vmul.f32 %v647, %v622
    %v656 = vmul.f32 %v647, %v623
    %v657 = vmul.f32 %v647, %v624
    %v658 = vmul.f32 %v647, %v625
    %v659 = vmul.f32 %v647, %v626
    %v660 = vmul.f32 %v647, %v627
    %v661 = vmul.f32 %v647, %v628
    %v662 = vmul.f32 %v647, %v629
    %v663 = vmul.f32 %v647, %v630
    %v664 = vmul.f32 %v647, %v631
    %v665 = vmul.f32 %v647, %v632
    %v666 = vmul.f32 %v647, %v633
    %v667 = vmul.f32 %v647, %v634
    %v668 = vmul.f32 %v647, %v635
    %v669 = vmul.f32 %v647, %v636
    %v670 = vmul.f32 %v647, %v637
    %v671 = vmul.f32 %v647, %v638
    %v672 = vmul.f32 %v647, %v639
    %v673 = vmul.f32 %v647, %v640
    %v674 = vmul.f32 %v647, %v641
    %v675 = vmul.f32 %v647, %v642
    %v676 = vmul.f32 %v647, %v643
    %v677 = vmul.f32 %v647, %v644
    %v678 = vmul.f32 %v647, %v645
    %v679 = vmul.f32 %v647, %v646
    %s680 = sld [smem:[#allocation7 + $0x1]]
    %s681 = scalar_lea.vmem [#allocation9], 256
    %v682 = vld [vmem:[%s681] sm:$0xff]
    %v683 = vld [vmem:[%s681 + $0x8] sm:$0xff]
    %v684 = vld [vmem:[%s681 + $0x10] sm:$0xff]
    %v685 = vld [vmem:[%s681 + $0x18] sm:$0xff]
    %v686 = vld [vmem:[%s681 + $0x20] sm:$0xff]
    %v687 = vld [vmem:[%s681 + $0x28] sm:$0xff]
    %v688 = vld [vmem:[%s681 + $0x30] sm:$0xff]
    %v689 = vld [vmem:[%s681 + $0x38] sm:$0xff]
    %v690 = vld [vmem:[%s681 + $0x40] sm:$0xff]
    %v691 = vld [vmem:[%s681 + $0x48] sm:$0xff]
    %v692 = vld [vmem:[%s681 + $0x50] sm:$0xff]
    %v693 = vld [vmem:[%s681 + $0x58] sm:$0xff]
    %v694 = vld [vmem:[%s681 + $0x60] sm:$0xff]
    %v695 = vld [vmem:[%s681 + $0x68] sm:$0xff]
    %v696 = vld [vmem:[%s681 + $0x70] sm:$0xff]
    %v697 = vld [vmem:[%s681 + $0x78] sm:$0xff]
    %v698 = vld [vmem:[%s681 + $0x80] sm:$0xff]
    %v699 = vld [vmem:[%s681 + $0x88] sm:$0xff]
    %v700 = vld [vmem:[%s681 + $0x90] sm:$0xff]
    %v701 = vld [vmem:[%s681 + $0x98] sm:$0xff]
    %v702 = vld [vmem:[%s681 + $0xa0] sm:$0xff]
    %v703 = vld [vmem:[%s681 + $0xa8] sm:$0xff]
    %v704 = vld [vmem:[%s681 + $0xb0] sm:$0xff]
    %v705 = vld [vmem:[%s681 + $0xb8] sm:$0xff]
    %v706 = vld [vmem:[%s681 + $0xc0] sm:$0xff]
    %v707 = vld [vmem:[%s681 + $0xc8] sm:$0xff]
    %v708 = vld [vmem:[%s681 + $0xd0] sm:$0xff]
    %v709 = vld [vmem:[%s681 + $0xd8] sm:$0xff]
    %v710 = vld [vmem:[%s681 + $0xe0] sm:$0xff]
    %v711 = vld [vmem:[%s681 + $0xe8] sm:$0xff]
    %v712 = vld [vmem:[%s681 + $0xf0] sm:$0xff]
    %v713 = vld [vmem:[%s681 + $0xf8] sm:$0xff]
    %v714 = vstv %s680
    %v715 = vmul.f32 %v714, %v682
    %v716 = vmul.f32 %v714, %v683
    %v717 = vmul.f32 %v714, %v684
    %v718 = vmul.f32 %v714, %v685
    %v719 = vmul.f32 %v714, %v686
    %v720 = vmul.f32 %v714, %v687
    %v721 = vmul.f32 %v714, %v688
    %v722 = vmul.f32 %v714, %v689
    %v723 = vmul.f32 %v714, %v690
    %v724 = vmul.f32 %v714, %v691
    %v725 = vmul.f32 %v714, %v692
    %v726 = vmul.f32 %v714, %v693
    %v727 = vmul.f32 %v714, %v694
    %v728 = vmul.f32 %v714, %v695
    %v729 = vmul.f32 %v714, %v696
    %v730 = vmul.f32 %v714, %v697
    %v731 = vmul.f32 %v714, %v698
    %v732 = vmul.f32 %v714, %v699
    %v733 = vmul.f32 %v714, %v700
    %v734 = vmul.f32 %v714, %v701
    %v735 = vmul.f32 %v714, %v702
    %v736 = vmul.f32 %v714, %v703
    %v737 = vmul.f32 %v714, %v704
    %v738 = vmul.f32 %v714, %v705
    %v739 = vmul.f32 %v714, %v706
    %v740 = vmul.f32 %v714, %v707
    %v741 = vmul.f32 %v714, %v708
    %v742 = vmul.f32 %v714, %v709
    %v743 = vmul.f32 %v714, %v710
    %v744 = vmul.f32 %v714, %v711
    %v745 = vmul.f32 %v714, %v712
    %v746 = vmul.f32 %v714, %v713
    %v747 = vadd.f32 %v648, %v715
    %v748 = vadd.f32 %v649, %v716
    %v749 = vadd.f32 %v650, %v717
    %v750 = vadd.f32 %v651, %v718
    %v751 = vadd.f32 %v652, %v719
    %v752 = vadd.f32 %v653, %v720
    %v753 = vadd.f32 %v654, %v721
    %v754 = vadd.f32 %v655, %v722
    %v755 = vadd.f32 %v656, %v723
    %v756 = vadd.f32 %v657, %v724
    %v757 = vadd.f32 %v658, %v725
    %v758 = vadd.f32 %v659, %v726
    %v759 = vadd.f32 %v660, %v727
    %v760 = vadd.f32 %v661, %v728
    %v761 = vadd.f32 %v662, %v729
    %v762 = vadd.f32 %v663, %v730
    %v763 = vadd.f32 %v664, %v731
    %v764 = vadd.f32 %v665, %v732
    %v765 = vadd.f32 %v666, %v733
    %v766 = vadd.f32 %v667, %v734
    %v767 = vadd.f32 %v668, %v735
    %v768 = vadd.f32 %v669, %v736
    %v769 = vadd.f32 %v670, %v737
    %v770 = vadd.f32 %v671, %v738
    %v771 = vadd.f32 %v672, %v739
    %v772 = vadd.f32 %v673, %v740
    %v773 = vadd.f32 %v674, %v741
    %v774 = vadd.f32 %v675, %v742
    %v775 = vadd.f32 %v676, %v743
    %v776 = vadd.f32 %v677, %v744
    %v777 = vadd.f32 %v678, %v745
    %v778 = vadd.f32 %v679, %v746
    %s779 = scalar_lea.vmem %s6, 1
    %v780 = vld [vmem:[%s779] sm:$0x1]
    %v782 = vlaneseq
    %v783 = vshrl.u32 %v782, 7
    %v784 = vsub.s32 0, %v783
    %v785 = vrot.slane %v780, %v784
    %787 = vmatprep.subr.mxu0 0.0
    %788 = vmatpush1.msra.mxu0 %v105
    %789 = vmatprep.subr.mxu0 0.0
    %790 = vmatpush1.msra.mxu0 %v106
    %791 = vmatprep.subr.mxu0 0.0
    %792 = vmatpush1.msra.mxu0 %v107
    %793 = vmatprep.subr.mxu0 0.0
    %794 = vmatpush1.msra.mxu0 %v108
    %795 = vmatprep.subr.mxu0 0.0
    %796 = vmatpush1.msra.mxu0 %v109
    %797 = vmatprep.subr.mxu0 0.0
    %798 = vmatpush1.msra.mxu0 %v110
    %799 = vmatprep.subr.mxu0 0.0
    %800 = vmatpush1.msra.mxu0 %v111
    %801 = vmatprep.subr.mxu0 0.0
    %802 = vmatpush1.msra.mxu0 %v112
    %803 = vmatprep.subr.mxu0 0.0
    %804 = vmatpush1.msra.mxu0 %v113
    %805 = vmatprep.subr.mxu0 0.0
    %806 = vmatpush1.msra.mxu0 %v114
    %807 = vmatprep.subr.mxu0 0.0
    %808 = vmatpush1.msra.mxu0 %v115
    %809 = vmatprep.subr.mxu0 0.0
    %810 = vmatpush1.msra.mxu0 %v116
    %811 = vmatprep.subr.mxu0 0.0
    %812 = vmatpush1.msra.mxu0 %v117
    %813 = vmatprep.subr.mxu0 0.0
    %814 = vmatpush1.msra.mxu0 %v118
    %815 = vmatprep.subr.mxu0 0.0
    %816 = vmatpush1.msra.mxu0 %v119
    %817 = vmatprep.subr.mxu0 0.0
    %818 = vmatpush1.msra.mxu0 %v120
    %819 = vmatprep.subr.mxu0 0.0
    %820 = vmatpush1.msra.mxu0 0.0
    %821 = vmatprep.subr.mxu0 0.0
    %822 = vmatpush1.msra.mxu0 0.0
    %823 = vmatprep.subr.mxu0 0.0
    %824 = vmatpush1.msra.mxu0 0.0
    %825 = vmatprep.subr.mxu0 0.0
    %826 = vmatpush1.msra.mxu0 0.0
    %827 = vmatprep.subr.mxu0 0.0
    %828 = vmatpush1.msra.mxu0 0.0
    %829 = vmatprep.subr.mxu0 0.0
    %830 = vmatpush1.msra.mxu0 0.0
    %831 = vmatprep.subr.mxu0 0.0
    %832 = vmatpush1.msra.mxu0 0.0
    %833 = vmatprep.subr.mxu0 0.0
    %834 = vmatpush1.msra.mxu0 0.0
    %835 = vmatprep.subr.mxu0 0.0
    %836 = vmatpush1.msra.mxu0 0.0
    %837 = vmatprep.subr.mxu0 0.0
    %838 = vmatpush1.msra.mxu0 0.0
    %839 = vmatprep.subr.mxu0 0.0
    %840 = vmatpush1.msra.mxu0 0.0
    %841 = vmatprep.subr.mxu0 0.0
    %842 = vmatpush1.msra.mxu0 0.0
    %843 = vmatprep.subr.mxu0 0.0
    %844 = vmatpush1.msra.mxu0 0.0
    %845 = vmatprep.subr.mxu0 0.0
    %846 = vmatpush1.msra.mxu0 0.0
    %847 = vmatprep.subr.mxu0 0.0
    %848 = vmatpush1.msra.mxu0 0.0
    %849 = vmatprep.subr.mxu0 0.0
    %850 = vmatpush1.msra.mxu0 0.0
    %851 = vmatprep.mubr.f32.mxu0 0.0
    %852 = vmatmul.mubr.f32.gmra.mrb[0].mxu0 %v747
    %v853 = vpop.f32.mrb[0].mxu0
    %v854 = vadd.f32 %v785, %v853
    %v855 = vpop.f32.mrb[0].mxu0
    %856 = vmatprep.mubr.f32.mxu0 0.0
    %857 = vmatmul.mubr.f32.gmra.mrb[0].mxu0 %v748
    %v858 = vpop.f32.mrb[0].mxu0
    %v859 = vadd.f32 %v785, %v858
    %v860 = vpop.f32.mrb[0].mxu0
    %861 = vmatprep.mubr.f32.mxu0 0.0
    %862 = vmatmul.mubr.f32.gmra.mrb[0].mxu0 %v749
    %v863 = vpop.f32.mrb[0].mxu0
    %v864 = vadd.f32 %v785, %v863
    %v865 = vpop.f32.mrb[0].mxu0
    %866 = vmatprep.mubr.f32.mxu0 0.0
    %867 = vmatmul.mubr.f32.gmra.mrb[0].mxu0 %v750
    %v868 = vpop.f32.mrb[0].mxu0
    %v869 = vadd.f32 %v785, %v868
    %v870 = vpop.f32.mrb[0].mxu0
    %871 = vmatprep.mubr.f32.mxu0 0.0
    %872 = vmatmul.mubr.f32.gmra.mrb[0].mxu0 %v751
    %v873 = vpop.f32.mrb[0].mxu0
    %v874 = vadd.f32 %v785, %v873
    %v875 = vpop.f32.mrb[0].mxu0
    %876 = vmatprep.mubr.f32.mxu0 0.0
    %877 = vmatmul.mubr.f32.gmra.mrb[0].mxu0 %v752
    %v878 = vpop.f32.mrb[0].mxu0
    %v879 = vadd.f32 %v785, %v878
    %v880 = vpop.f32.mrb[0].mxu0
    %881 = vmatprep.mubr.f32.mxu0 0.0
    %882 = vmatmul.mubr.f32.gmra.mrb[0].mxu0 %v753
    %v883 = vpop.f32.mrb[0].mxu0
    %v884 = vadd.f32 %v785, %v883
    %v885 = vpop.f32.mrb[0].mxu0
    %886 = vmatprep.mubr.f32.mxu0 0.0
    %887 = vmatmul.mubr.f32.gmra.mrb[0].mxu0 %v754
    %v888 = vpop.f32.mrb[0].mxu0
    %v889 = vadd.f32 %v785, %v888
    %v890 = vpop.f32.mrb[0].mxu0
    %891 = vmatprep.mubr.f32.mxu0 0.0
    %892 = vmatmul.mubr.f32.gmra.mrb[0].mxu0 %v755
    %v893 = vpop.f32.mrb[0].mxu0
    %v894 = vadd.f32 %v785, %v893
    %v895 = vpop.f32.mrb[0].mxu0
    %896 = vmatprep.mubr.f32.mxu0 0.0
    %897 = vmatmul.mubr.f32.gmra.mrb[0].mxu0 %v756
    %v898 = vpop.f32.mrb[0].mxu0
    %v899 = vadd.f32 %v785, %v898
    %v900 = vpop.f32.mrb[0].mxu0
    %901 = vmatprep.mubr.f32.mxu0 0.0
    %902 = vmatmul.mubr.f32.gmra.mrb[0].mxu0 %v757
    %v903 = vpop.f32.mrb[0].mxu0
    %v904 = vadd.f32 %v785, %v903
    %v905 = vpop.f32.mrb[0].mxu0
    %906 = vmatprep.mubr.f32.mxu0 0.0
    %907 = vmatmul.mubr.f32.gmra.mrb[0].mxu0 %v758
    %v908 = vpop.f32.mrb[0].mxu0
    %v909 = vadd.f32 %v785, %v908
    %v910 = vpop.f32.mrb[0].mxu0
    %911 = vmatprep.mubr.f32.mxu0 0.0
    %912 = vmatmul.mubr.f32.gmra.mrb[0].mxu0 %v759
    %v913 = vpop.f32.mrb[0].mxu0
    %v914 = vadd.f32 %v785, %v913
    %v915 = vpop.f32.mrb[0].mxu0
    %916 = vmatprep.mubr.f32.mxu0 0.0
    %917 = vmatmul.mubr.f32.gmra.mrb[0].mxu0 %v760
    %v918 = vpop.f32.mrb[0].mxu0
    %v919 = vadd.f32 %v785, %v918
    %v920 = vpop.f32.mrb[0].mxu0
    %921 = vmatprep.mubr.f32.mxu0 0.0
    %922 = vmatmul.mubr.f32.gmra.mrb[0].mxu0 %v761
    %v923 = vpop.f32.mrb[0].mxu0
    %v924 = vadd.f32 %v785, %v923
    %v925 = vpop.f32.mrb[0].mxu0
    %926 = vmatprep.mubr.f32.mxu0 0.0
    %927 = vmatmul.mubr.f32.gmra.mrb[0].mxu0 %v762
    %v928 = vpop.f32.mrb[0].mxu0
    %v929 = vadd.f32 %v785, %v928
    %v930 = vpop.f32.mrb[0].mxu0
    %931 = vmatprep.mubr.f32.mxu0 0.0
    %932 = vmatmul.mubr.f32.gmra.mrb[0].mxu0 %v763
    %v933 = vpop.f32.mrb[0].mxu0
    %v934 = vadd.f32 %v785, %v933
    %v935 = vpop.f32.mrb[0].mxu0
    %936 = vmatprep.mubr.f32.mxu0 0.0
    %937 = vmatmul.mubr.f32.gmra.mrb[0].mxu0 %v764
    %v938 = vpop.f32.mrb[0].mxu0
    %v939 = vadd.f32 %v785, %v938
    %v940 = vpop.f32.mrb[0].mxu0
    %941 = vmatprep.mubr.f32.mxu0 0.0
    %942 = vmatmul.mubr.f32.gmra.mrb[0].mxu0 %v765
    %v943 = vpop.f32.mrb[0].mxu0
    %v944 = vadd.f32 %v785, %v943
    %v945 = vpop.f32.mrb[0].mxu0
    %946 = vmatprep.mubr.f32.mxu0 0.0
    %947 = vmatmul.mubr.f32.gmra.mrb[0].mxu0 %v766
    %v948 = vpop.f32.mrb[0].mxu0
    %v949 = vadd.f32 %v785, %v948
    %v950 = vpop.f32.mrb[0].mxu0
    %951 = vmatprep.mubr.f32.mxu0 0.0
    %952 = vmatmul.mubr.f32.gmra.mrb[0].mxu0 %v767
    %v953 = vpop.f32.mrb[0].mxu0
    %v954 = vadd.f32 %v785, %v953
    %v955 = vpop.f32.mrb[0].mxu0
    %956 = vmatprep.mubr.f32.mxu0 0.0
    %957 = vmatmul.mubr.f32.gmra.mrb[0].mxu0 %v768
    %v958 = vpop.f32.mrb[0].mxu0
    %v959 = vadd.f32 %v785, %v958
    %v960 = vpop.f32.mrb[0].mxu0
    %961 = vmatprep.mubr.f32.mxu0 0.0
    %962 = vmatmul.mubr.f32.gmra.mrb[0].mxu0 %v769
    %v963 = vpop.f32.mrb[0].mxu0
    %v964 = vadd.f32 %v785, %v963
    %v965 = vpop.f32.mrb[0].mxu0
    %966 = vmatprep.mubr.f32.mxu0 0.0
    %967 = vmatmul.mubr.f32.gmra.mrb[0].mxu0 %v770
    %v968 = vpop.f32.mrb[0].mxu0
    %v969 = vadd.f32 %v785, %v968
    %v970 = vpop.f32.mrb[0].mxu0
    %971 = vmatprep.mubr.f32.mxu0 0.0
    %972 = vmatmul.mubr.f32.gmra.mrb[0].mxu0 %v771
    %v973 = vpop.f32.mrb[0].mxu0
    %v974 = vadd.f32 %v785, %v973
    %v975 = vpop.f32.mrb[0].mxu0
    %976 = vmatprep.mubr.f32.mxu0 0.0
    %977 = vmatmul.mubr.f32.gmra.mrb[0].mxu0 %v772
    %v978 = vpop.f32.mrb[0].mxu0
    %v979 = vadd.f32 %v785, %v978
    %v980 = vpop.f32.mrb[0].mxu0
    %981 = vmatprep.mubr.f32.mxu0 0.0
    %982 = vmatmul.mubr.f32.gmra.mrb[0].mxu0 %v773
    %v983 = vpop.f32.mrb[0].mxu0
    %v984 = vadd.f32 %v785, %v983
    %v985 = vpop.f32.mrb[0].mxu0
    %986 = vmatprep.mubr.f32.mxu0 0.0
    %987 = vmatmul.mubr.f32.gmra.mrb[0].mxu0 %v774
    %v988 = vpop.f32.mrb[0].mxu0
    %v989 = vadd.f32 %v785, %v988
    %v990 = vpop.f32.mrb[0].mxu0
    %991 = vmatprep.mubr.f32.mxu0 0.0
    %992 = vmatmul.mubr.f32.gmra.mrb[0].mxu0 %v775
    %v993 = vpop.f32.mrb[0].mxu0
    %v994 = vadd.f32 %v785, %v993
    %v995 = vpop.f32.mrb[0].mxu0
    %996 = vmatprep.mubr.f32.mxu0 0.0
    %997 = vmatmul.mubr.f32.gmra.mrb[0].mxu0 %v776
    %v998 = vpop.f32.mrb[0].mxu0
    %v999 = vadd.f32 %v785, %v998
    %v1000 = vpop.f32.mrb[0].mxu0
    %1001 = vmatprep.mubr.f32.mxu0 0.0
    %1002 = vmatmul.mubr.f32.gmra.mrb[0].mxu0 %v777
    %v1003 = vpop.f32.mrb[0].mxu0
    %v1004 = vadd.f32 %v785, %v1003
    %v1005 = vpop.f32.mrb[0].mxu0
    %1006 = vmatprep.mubr.f32.mxu0 0.0
    %1007 = vmatmul.mubr.f32.gmra.mrb[0].mxu0 %v778
    %v1008 = vpop.f32.mrb[0].mxu0
    %v1009 = vadd.f32 %v785, %v1008
    %v1010 = vpop.f32.mrb[0].mxu0
    %1011 = vdwg.mxu0
    %s1012 = scalar_lea.vmem [#allocation11], 256
    %v1013 = vld [vmem:[%s1012] sm:$0xff]
    %v1014 = vld [vmem:[%s1012 + $0x8] sm:$0xff]
    %v1015 = vld [vmem:[%s1012 + $0x10] sm:$0xff]
    %v1016 = vld [vmem:[%s1012 + $0x18] sm:$0xff]
    %v1017 = vld [vmem:[%s1012 + $0x20] sm:$0xff]
    %v1018 = vld [vmem:[%s1012 + $0x28] sm:$0xff]
    %v1019 = vld [vmem:[%s1012 + $0x30] sm:$0xff]
    %v1020 = vld [vmem:[%s1012 + $0x38] sm:$0xff]
    %v1021 = vld [vmem:[%s1012 + $0x40] sm:$0xff]
    %v1022 = vld [vmem:[%s1012 + $0x48] sm:$0xff]
    %v1023 = vld [vmem:[%s1012 + $0x50] sm:$0xff]
    %v1024 = vld [vmem:[%s1012 + $0x58] sm:$0xff]
    %v1025 = vld [vmem:[%s1012 + $0x60] sm:$0xff]
    %v1026 = vld [vmem:[%s1012 + $0x68] sm:$0xff]
    %v1027 = vld [vmem:[%s1012 + $0x70] sm:$0xff]
    %v1028 = vld [vmem:[%s1012 + $0x78] sm:$0xff]
    %v1029 = vld [vmem:[%s1012 + $0x80] sm:$0xff]
    %v1030 = vld [vmem:[%s1012 + $0x88] sm:$0xff]
    %v1031 = vld [vmem:[%s1012 + $0x90] sm:$0xff]
    %v1032 = vld [vmem:[%s1012 + $0x98] sm:$0xff]
    %v1033 = vld [vmem:[%s1012 + $0xa0] sm:$0xff]
    %v1034 = vld [vmem:[%s1012 + $0xa8] sm:$0xff]
    %v1035 = vld [vmem:[%s1012 + $0xb0] sm:$0xff]
    %v1036 = vld [vmem:[%s1012 + $0xb8] sm:$0xff]
    %v1037 = vld [vmem:[%s1012 + $0xc0] sm:$0xff]
    %v1038 = vld [vmem:[%s1012 + $0xc8] sm:$0xff]
    %v1039 = vld [vmem:[%s1012 + $0xd0] sm:$0xff]
    %v1040 = vld [vmem:[%s1012 + $0xd8] sm:$0xff]
    %v1041 = vld [vmem:[%s1012 + $0xe0] sm:$0xff]
    %v1042 = vld [vmem:[%s1012 + $0xe8] sm:$0xff]
    %v1043 = vld [vmem:[%s1012 + $0xf0] sm:$0xff]
    %v1044 = vld [vmem:[%s1012 + $0xf8] sm:$0xff]
    %v1045 = vsub.f32 %v854, %v1013
    %v1046 = vsub.f32 %v859, %v1014
    %v1047 = vsub.f32 %v864, %v1015
    %v1048 = vsub.f32 %v869, %v1016
    %v1049 = vsub.f32 %v874, %v1017
    %v1050 = vsub.f32 %v879, %v1018
    %v1051 = vsub.f32 %v884, %v1019
    %v1052 = vsub.f32 %v889, %v1020
    %v1053 = vsub.f32 %v894, %v1021
    %v1054 = vsub.f32 %v899, %v1022
    %v1055 = vsub.f32 %v904, %v1023
    %v1056 = vsub.f32 %v909, %v1024
    %v1057 = vsub.f32 %v914, %v1025
    %v1058 = vsub.f32 %v919, %v1026
    %v1059 = vsub.f32 %v924, %v1027
    %v1060 = vsub.f32 %v929, %v1028
    %v1061 = vsub.f32 %v934, %v1029
    %v1062 = vsub.f32 %v939, %v1030
    %v1063 = vsub.f32 %v944, %v1031
    %v1064 = vsub.f32 %v949, %v1032
    %v1065 = vsub.f32 %v954, %v1033
    %v1066 = vsub.f32 %v959, %v1034
    %v1067 = vsub.f32 %v964, %v1035
    %v1068 = vsub.f32 %v969, %v1036
    %v1069 = vsub.f32 %v974, %v1037
    %v1070 = vsub.f32 %v979, %v1038
    %v1071 = vsub.f32 %v984, %v1039
    %v1072 = vsub.f32 %v989, %v1040
    %v1073 = vsub.f32 %v994, %v1041
    %v1074 = vsub.f32 %v999, %v1042
    %v1075 = vsub.f32 %v1004, %v1043
    %v1076 = vsub.f32 %v1009, %v1044
    %v1077 = vand.u32 2147483647, %v1045
    %v1078 = vand.u32 2147483647, %v1046
    %v1079 = vand.u32 2147483647, %v1047
    %v1080 = vand.u32 2147483647, %v1048
    %v1081 = vand.u32 2147483647, %v1049
    %v1082 = vand.u32 2147483647, %v1050
    %v1083 = vand.u32 2147483647, %v1051
    %v1084 = vand.u32 2147483647, %v1052
    %v1085 = vand.u32 2147483647, %v1053
    %v1086 = vand.u32 2147483647, %v1054
    %v1087 = vand.u32 2147483647, %v1055
    %v1088 = vand.u32 2147483647, %v1056
    %v1089 = vand.u32 2147483647, %v1057
    %v1090 = vand.u32 2147483647, %v1058
    %v1091 = vand.u32 2147483647, %v1059
    %v1092 = vand.u32 2147483647, %v1060
    %v1093 = vand.u32 2147483647, %v1061
    %v1094 = vand.u32 2147483647, %v1062
    %v1095 = vand.u32 2147483647, %v1063
    %v1096 = vand.u32 2147483647, %v1064
    %v1097 = vand.u32 2147483647, %v1065
    %v1098 = vand.u32 2147483647, %v1066
    %v1099 = vand.u32 2147483647, %v1067
    %v1100 = vand.u32 2147483647, %v1068
    %v1101 = vand.u32 2147483647, %v1069
    %v1102 = vand.u32 2147483647, %v1070
    %v1103 = vand.u32 2147483647, %v1071
    %v1104 = vand.u32 2147483647, %v1072
    %v1105 = vand.u32 2147483647, %v1073
    %v1106 = vand.u32 2147483647, %v1074
    %v1107 = vand.u32 2147483647, %v1075
    %v1108 = vand.u32 2147483647, %v1076
    %v1109 = vadd.f32 %v581, %v1077
    %v1110 = vadd.f32 %v582, %v1078
    %v1111 = vadd.f32 %v583, %v1079
    %v1112 = vadd.f32 %v584, %v1080
    %v1113 = vadd.f32 %v585, %v1081
    %v1114 = vadd.f32 %v586, %v1082
    %v1115 = vadd.f32 %v587, %v1083
    %v1116 = vadd.f32 %v588, %v1084
    %v1117 = vadd.f32 %v589, %v1085
    %v1118 = vadd.f32 %v590, %v1086
    %v1119 = vadd.f32 %v591, %v1087
    %v1120 = vadd.f32 %v592, %v1088
    %v1121 = vadd.f32 %v593, %v1089
    %v1122 = vadd.f32 %v594, %v1090
    %v1123 = vadd.f32 %v595, %v1091
    %v1124 = vadd.f32 %v596, %v1092
    %v1125 = vadd.f32 %v597, %v1093
    %v1126 = vadd.f32 %v598, %v1094
    %v1127 = vadd.f32 %v599, %v1095
    %v1128 = vadd.f32 %v600, %v1096
    %v1129 = vadd.f32 %v601, %v1097
    %v1130 = vadd.f32 %v602, %v1098
    %v1131 = vadd.f32 %v603, %v1099
    %v1132 = vadd.f32 %v604, %v1100
    %v1133 = vadd.f32 %v605, %v1101
    %v1134 = vadd.f32 %v606, %v1102
    %v1135 = vadd.f32 %v607, %v1103
    %v1136 = vadd.f32 %v608, %v1104
    %v1137 = vadd.f32 %v609, %v1105
    %v1138 = vadd.f32 %v610, %v1106
    %v1139 = vadd.f32 %v611, %v1107
    %v1140 = vadd.f32 %v612, %v1108
    %v1141 = vadd.f32 %v1109, %v1110
    %v1142 = vadd.f32 %v1141, %v1111
    %v1143 = vadd.f32 %v1142, %v1112
    %v1144 = vadd.f32 %v1143, %v1113
    %v1145 = vadd.f32 %v1144, %v1114
    %v1146 = vadd.f32 %v1145, %v1115
    %v1147 = vadd.f32 %v1146, %v1116
    %v1148 = vadd.f32 %v1147, %v1117
    %v1149 = vadd.f32 %v1148, %v1118
    %v1150 = vadd.f32 %v1149, %v1119
    %v1151 = vadd.f32 %v1150, %v1120
    %v1152 = vadd.f32 %v1151, %v1121
    %v1153 = vadd.f32 %v1152, %v1122
    %v1154 = vadd.f32 %v1153, %v1123
    %v1155 = vadd.f32 %v1154, %v1124
    %v1156 = vadd.f32 %v1155, %v1125
    %v1157 = vadd.f32 %v1156, %v1126
    %v1158 = vadd.f32 %v1157, %v1127
    %v1159 = vadd.f32 %v1158, %v1128
    %v1160 = vadd.f32 %v1159, %v1129
    %v1161 = vadd.f32 %v1160, %v1130
    %v1162 = vadd.f32 %v1161, %v1131
    %v1163 = vadd.f32 %v1162, %v1132
    %v1164 = vadd.f32 %v1163, %v1133
    %v1165 = vadd.f32 %v1164, %v1134
    %v1166 = vadd.f32 %v1165, %v1135
    %v1167 = vadd.f32 %v1166, %v1136
    %v1168 = vadd.f32 %v1167, %v1137
    %v1169 = vadd.f32 %v1168, %v1138
    %v1170 = vadd.f32 %v1169, %v1139
    %v1171 = vadd.f32 %v1170, %v1140
    %1172 = vadd.xlane.f32.xlu0 %v1171
    %v1173 = vpop.xlane.xlu0 %1172
    %v1174 = vrot.slane %v1173, 4
    %v1175 = vadd.f32 %v1173, %v1174
    %v1176 = vrot.slane %v1175, 2
    %v1177 = vadd.f32 %v1175, %v1176
    %v1178 = vrot.slane %v1177, 1
    %v1179 = vadd.f32 %v1177, %v1178
    %s1180 = vtos %v1179
    %s1181 = scalar_lea.smem [#allocation14], 0
    %1182 = sst [smem:[%s1181]] %s1180
    // Predicated region
    $region54: #{tpu_custom_call.1} parent=1 // pred_check
      _
    $region55: #{tpu_custom_call.1} parent=1 // pred_check_branch
      %1184 = sbr.rel (0) target = $region57
    $region56: #{tpu_custom_call.1} parent=1 // pred_region
      %s1186 = ssub.s32 16, 16
      %1187 = vsyncadd [#allocation5], %s1186
      %1190 = dma.smem_to_hbm [#allocation14], 16, %s7, [#allocation5]
    $region57: #{tpu_custom_call.1} parent=1 // pred_fallthru
      _
    // Predicated region
    $region58: #{tpu_custom_call.1} parent=1 // pred_check
      _
    $region59: #{tpu_custom_call.1} parent=1 // pred_check_branch
      %1192 = sbr.rel (0) target = $region61
    $region60: #{tpu_custom_call.1} parent=1 // pred_region
      %1193 = dma.done [#allocation5], 16
    $region61: #{tpu_custom_call.1} parent=1 // pred_fallthru
      _
    %1194 = sfence
    %1195 = vsyncpa [#allocation3], 1
    %1196 = vsyncpa [#allocation10], 1
    %1197 = vsyncpa [#allocation13], 1
    %1198 = vsyncpa [#allocation4], 1
    %1199 = vsyncpa [#allocation5], 1
    %1200 = vsyncpa [#allocation6], 1

</llo_original>
